<compile_context>
chip_gen: v7x
topology: tpu7x:2x2x1
jax: 0.10.0
libtpu: 0.0.40
codegen_flags: <defaults>
</compile_context>

<pallas_src>
import jax
import jax.numpy as jnp
from jax import lax
from jax.experimental import pallas as pl
from jax.experimental.pallas import tpu as pltpu


def _embed_kernel(ids_ref, emb_ref, out_ref, acc_ref):
    """One grid step: (token tile t, vocab tile v).

    ids_ref : VMEM int32[TILE_TOKENS, 1]      ids for this token tile
    emb_ref : VMEM f32[TILE_VOCAB, D_pad]     slab of the embedding table
    out_ref : VMEM f32[TILE_TOKENS, D_pad]    output tile (resident across v)
    acc_ref : VMEM f32[TILE_TOKENS, D_pad]    accumulator scratch
    """
    v = pl.program_id(1)

    @pl.when(v == 0)
    def _init():
        acc_ref[...] = jnp.zeros_like(acc_ref)

    tile_tokens = out_ref.shape[0]
    tile_vocab = emb_ref.shape[0]

    ids = ids_ref[...]  # (TILE_TOKENS, 1) int32
    # Global vocab index of every column of this table slab.
    vocab_ids = v * tile_vocab + lax.broadcasted_iota(
        jnp.int32, (tile_tokens, tile_vocab), 1
    )
    one_hot = (vocab_ids == ids).astype(emb_ref.dtype)  # (TILE_TOKENS, TILE_VOCAB)

    # MXU matmul does the gather for the whole tile at once.
    acc_ref[...] += jnp.dot(
        one_hot, emb_ref[...], preferred_element_type=jnp.float32
    )

    @pl.when(v == pl.num_programs(1) - 1)
    def _finalize():
        out_ref[...] = acc_ref[...].astype(out_ref.dtype)


def embedding_lookup(ids, emb_table, *, tile_tokens=256, tile_vocab=512):
    """ids: int[batch, seq]; emb_table: f32[vocab, dim] -> f32[batch, seq, dim]."""
    batch, seq = ids.shape
    vocab, dim = emb_table.shape
    n = batch * seq

    tile_vocab = min(tile_vocab, vocab)

    # Pad token count to the tile size, dim to a lane-dense multiple of 128,
    # vocab to a multiple of the vocab tile.
    n_pad = pl.cdiv(n, tile_tokens) * tile_tokens
    dim_pad = pl.cdiv(dim, 128) * 128
    v_pad = pl.cdiv(vocab, tile_vocab) * tile_vocab

    ids_flat = ids.reshape(n).astype(jnp.int32)
    if n_pad != n:
        ids_flat = jnp.pad(ids_flat, (0, n_pad - n))
    ids_2d = ids_flat.reshape(n_pad, 1)

    table = emb_table
    if (v_pad, dim_pad) != (vocab, dim):
        table = jnp.pad(table, ((0, v_pad - vocab), (0, dim_pad - dim)))

    grid = (n_pad // tile_tokens, v_pad // tile_vocab)

    itemsize = jnp.dtype(emb_table.dtype).itemsize
    # Double-buffered table + output blocks, accumulator, ids blocks (+ headroom).
    vmem_bytes = (
        2 * tile_vocab * dim_pad * itemsize
        + 2 * tile_tokens * dim_pad * itemsize
        + tile_tokens * dim_pad * 4
        + 2 * tile_tokens * 4
    )
    vmem_limit = int(min(max(2 * vmem_bytes, 4 * 1024 * 1024), 60 * 1024 * 1024))

    cost = pl.CostEstimate(
        flops=2 * n_pad * v_pad * dim_pad,
        transcendentals=0,
        bytes_accessed=(
            n_pad * 4                                       # ids
            + v_pad * dim_pad * itemsize * grid[0]          # table streamed per token tile
            + n_pad * dim_pad * itemsize                    # output
        ),
    )

    out = pl.pallas_call(
        _embed_kernel,
        out_shape=jax.ShapeDtypeStruct((n_pad, dim_pad), emb_table.dtype),
        grid_spec=pltpu.PrefetchScalarGridSpec(
            num_scalar_prefetch=0,
            grid=grid,
            in_specs=[
                # ids for this token tile (tiny, lane dim 1 is fine for int32 ids)
                pl.BlockSpec((tile_tokens, 1), lambda t, v: (t, 0)),
                # streamed table slab (double-buffered by the Pallas pipeline)
                pl.BlockSpec((tile_vocab, dim_pad), lambda t, v: (v, 0)),
            ],
            out_specs=pl.BlockSpec((tile_tokens, dim_pad), lambda t, v: (t, 0)),
            scratch_shapes=[pltpu.VMEM((tile_tokens, dim_pad), jnp.float32)],
        ),
        compiler_params=pltpu.CompilerParams(
            dimension_semantics=("parallel", "arbitrary"),
            vmem_limit_bytes=vmem_limit,
        ),
        cost_estimate=cost,
    )(ids_2d, table)

    return out[:n, :dim].reshape(batch, seq, dim)


if __name__ == "__main__":
    vocab_size = 64
    embedding_dim = 32
    batch, seq = 2, 8

    key = jax.random.PRNGKey(0)
    k_w, k_ids = jax.random.split(key)

    # Deterministic parameter init (nn.Embedding default: N(0, 1)).
    emb_table = jax.random.normal(k_w, (vocab_size, embedding_dim), dtype=jnp.float32)

    # Example token ids (what nn.Embedding's forward consumes).
    ids = jax.random.randint(k_ids, (batch, seq), 0, vocab_size, dtype=jnp.int32)

    out = embedding_lookup(ids, emb_table)
    out = jax.block_until_ready(out)

    # Reference check: plain JAX gather (== torch embedding lookup).
    # Tolerance is loose enough to cover any bf16-pass MXU rounding of the
    # f32 one-hot matmul while still catching a wrong-row gather.
    ref = jnp.take(emb_table, ids, axis=0)
    assert out.shape == (batch, seq, embedding_dim)
    assert jnp.allclose(out, ref, rtol=1e-2, atol=1e-2), "mismatch vs reference gather"

    print("KERNEL_OK")
</pallas_src>

<mosaic_0001>
module attributes {stable_mosaic.version = 11 : i64} {
  func.func @_embed_kernel(%arg0: i32, %arg1: i32, %arg2: memref<256x1xi32, #tpu.memory_space<vmem>>, %arg3: memref<64x128xf32, #tpu.memory_space<vmem>>, %arg4: memref<256x128xf32, #tpu.memory_space<vmem>>, %arg5: memref<256x128xf32, #tpu.memory_space<vmem>>) attributes {dimension_semantics = [#tpu.dimension_semantics<parallel>, #tpu.dimension_semantics<arbitrary>], iteration_bounds = array<i64: 1, 1>, scalar_prefetch = 0 : i64, scratch_operands = 1 : i64, tpu.core_type = #tpu.core_type<tc>, window_params = [{transform_indices = @transform_0, window_bounds = array<i64: 256, 1>}, {transform_indices = @transform_1, window_bounds = array<i64: 64, 128>}, {transform_indices = @transform_2, window_bounds = array<i64: 256, 128>}]} {
    %c0_i32 = arith.constant 0 : i32
    %0 = arith.cmpi eq, %arg1, %c0_i32 : i32
    %1 = arith.extui %0 : i1 to i32
    %c0_i32_0 = arith.constant 0 : i32
    %2 = arith.cmpi ne, %1, %c0_i32_0 : i32
    scf.if %2 {
      %cst_10 = arith.constant 0.000000e+00 : f32
      %20 = vector.broadcast %cst_10 : f32 to vector<256x128xf32>
      %c0_11 = arith.constant 0 : index
      %c0_12 = arith.constant 0 : index
      %21 = vector.load %arg5[%c0_11, %c0_12] : memref<256x128xf32, #tpu.memory_space<vmem>>, vector<256x128xf32>
      tpu.vector_store %arg5[%c0_11, %c0_12], %20 {strides = array<i32>} : memref<256x128xf32, #tpu.memory_space<vmem>>, vector<256x128xf32>,
    } else {
    }
    %c0 = arith.constant 0 : index
    %c0_1 = arith.constant 0 : index
    %3 = vector.load %arg2[%c0, %c0_1] : memref<256x1xi32, #tpu.memory_space<vmem>>, vector<256x1xi32>
    %c64_i32 = arith.constant 64 : i32
    %4 = arith.muli %arg1, %c64_i32 : i32
    %5 = tpu.iota {dimensions = array<i32: 1>} : vector<256x64xi32>
    %6 = vector.broadcast %4 : i32 to vector<256x64xi32>
    %7 = arith.addi %6, %5 : vector<256x64xi32>
    %8 = vector.broadcast %3 : vector<256x1xi32> to vector<256x64xi32>
    %9 = arith.cmpi eq, %7, %8 : vector<256x64xi32>
    %10 = arith.extui %9 : vector<256x64xi1> to vector<256x64xi32>
    %11 = arith.sitofp %10 : vector<256x64xi32> to vector<256x64xf32>
    %c0_2 = arith.constant 0 : index
    %c0_3 = arith.constant 0 : index
    %12 = vector.load %arg5[%c0_2, %c0_3] : memref<256x128xf32, #tpu.memory_space<vmem>>, vector<256x128xf32>
    %c0_4 = arith.constant 0 : index
    %c0_5 = arith.constant 0 : index
    %13 = vector.load %arg3[%c0_4, %c0_5] : memref<64x128xf32, #tpu.memory_space<vmem>>, vector<64x128xf32>
    %cst = arith.constant dense<0.000000e+00> : vector<256x128xf32>
    %14 = tpu.matmul %11, %13, %cst {dimension_numbers = #tpu.dot_dimension_numbers<[1], [0], [0], [1], [0, 0, 1, 1], [], []>} : vector<256x64xf32>, vector<64x128xf32>, vector<256x128xf32> -> vector<256x128xf32>
    %15 = arith.addf %12, %14 : vector<256x128xf32>
    %c0_6 = arith.constant 0 : index
    %c0_7 = arith.constant 0 : index
    %16 = vector.load %arg5[%c0_6, %c0_7] : memref<256x128xf32, #tpu.memory_space<vmem>>, vector<256x128xf32>
    tpu.vector_store %arg5[%c0_6, %c0_7], %15 {strides = array<i32>} : memref<256x128xf32, #tpu.memory_space<vmem>>, vector<256x128xf32>,
    %c0_i32_8 = arith.constant 0 : i32
    %17 = arith.cmpi eq, %arg1, %c0_i32_8 : i32
    %18 = arith.extui %17 : i1 to i32
    %c0_i32_9 = arith.constant 0 : i32
    %19 = arith.cmpi ne, %18, %c0_i32_9 : i32
    scf.if %19 {
      %c0_10 = arith.constant 0 : index
      %c0_11 = arith.constant 0 : index
      %20 = vector.load %arg5[%c0_10, %c0_11] : memref<256x128xf32, #tpu.memory_space<vmem>>, vector<256x128xf32>
      %c0_12 = arith.constant 0 : index
      %c0_13 = arith.constant 0 : index
      %21 = vector.load %arg4[%c0_12, %c0_13] : memref<256x128xf32, #tpu.memory_space<vmem>>, vector<256x128xf32>
      tpu.vector_store %arg4[%c0_12, %c0_13], %20 {strides = array<i32>} : memref<256x128xf32, #tpu.memory_space<vmem>>, vector<256x128xf32>,
    } else {
    }
    return
  }
  func.func @transform_0(%arg0: i32, %arg1: i32) -> (i32, i32) {
    %c0_i32 = arith.constant 0 : i32
    %c0_i32_0 = arith.constant 0 : i32
    return %arg0, %c0_i32 : i32, i32
  }
  func.func @transform_1(%arg0: i32, %arg1: i32) -> (i32, i32) {
    %c0_i32 = arith.constant 0 : i32
    %c0_i32_0 = arith.constant 0 : i32
    return %arg1, %c0_i32 : i32, i32
  }
  func.func @transform_2(%arg0: i32, %arg1: i32) -> (i32, i32) {
    %c0_i32 = arith.constant 0 : i32
    %c0_i32_0 = arith.constant 0 : i32
    return %arg0, %c0_i32 : i32, i32
  }
}

</mosaic_0001>

<llo_original>
// kernel: tpu_custom_call.1
$region0: #{tpu_custom_call.1}
  #allocation0 [shape = 'u32[]', space=smem, size = 0x4, offset = 0x4, fixed_abs, tag = 'smem constant byte address 0x4 - core index']
  #allocation1 [shape = 'u32[144,128]{1,0:T(1,128)}', space=vmem, size = 0x12000, scoped, tag = 'internal scratch']
  #allocation2 [shape = 'f32[256,128]{1,0:T(8,128)}', space=vmem, size = 0x20000, scoped, tag = 'scratch operand']
  %s0 = inlined_call_operand.vmem [shape: s32[256,1], index: 0, kind: input, shape index: {}]
  %s1 = inlined_call_operand.vmem [shape: f32[64,128], index: 1, kind: input, shape index: {}]
  %s2 = inlined_call_operand.hbm [shape: f32[256,128], index: 2, kind: output, shape index: {}]
  %s3 = sld [smem:[#allocation0]]
  $region26: #{tpu_custom_call.1} parent=0
    _
  %s5 = ssub.s32 1, %s3
  %s6 = scalar_select 0, %s5, %s3
  $region1: #{tpu_custom_call.1} parent=0
    #allocation3 [shape = 'u8[131072]{0}', space=vmem, size = 0x20000, scoped, tag = 'output window, operand 0, single buffered']
    #allocation4 [shape = 's32[1]{0}', space=sflag, size = 0x4, scoped, tag = 'scoped memory for tpu_custom_call.1']
    %7 = vsyncpa [#allocation4], 0
    // Predicated region
    $region2: #{tpu_custom_call.1} parent=1 // pred_check
      _
    $region3: #{tpu_custom_call.1} parent=1 // pred_check_branch
      %9 = sbr.rel (0) target = $region5
    $region4: #{tpu_custom_call.1} parent=1 // pred_region
      _
    $region5: #{tpu_custom_call.1} parent=1 // pred_fallthru
      _
    // Predicated region
    $region6: #{tpu_custom_call.1} parent=1 // pred_check
      _
    $region7: #{tpu_custom_call.1} parent=1 // pred_check_branch
      %11 = sbr.rel (0) target = $region9
    $region8: #{tpu_custom_call.1} parent=1 // pred_region
      _
    $region9: #{tpu_custom_call.1} parent=1 // pred_fallthru
      _
    %p12 = scmp.eq.s32.totalorder 0, 0
    // Predicated region
    $region10: #{tpu_custom_call.1} parent=1 // pred_check
      %p13 = pneg %p12
    $region11: #{tpu_custom_call.1} parent=1 // pred_check_branch
      %15 = sbr.rel (%p13) target = $region13
    $region12: #{tpu_custom_call.1} parent=1 // pred_region
      %16 = vst [vmem:[#allocation2] sm:$0xff] 0.0
      %17 = vst [vmem:[#allocation2 + $0x8] sm:$0xff] 0.0
      %18 = vst [vmem:[#allocation2 + $0x10] sm:$0xff] 0.0
      %19 = vst [vmem:[#allocation2 + $0x18] sm:$0xff] 0.0
      %20 = vst [vmem:[#allocation2 + $0x20] sm:$0xff] 0.0
      %21 = vst [vmem:[#allocation2 + $0x28] sm:$0xff] 0.0
      %22 = vst [vmem:[#allocation2 + $0x30] sm:$0xff] 0.0
      %23 = vst [vmem:[#allocation2 + $0x38] sm:$0xff] 0.0
      %24 = vst [vmem:[#allocation2 + $0x40] sm:$0xff] 0.0
      %25 = vst [vmem:[#allocation2 + $0x48] sm:$0xff] 0.0
      %26 = vst [vmem:[#allocation2 + $0x50] sm:$0xff] 0.0
      %27 = vst [vmem:[#allocation2 + $0x58] sm:$0xff] 0.0
      %28 = vst [vmem:[#allocation2 + $0x60] sm:$0xff] 0.0
      %29 = vst [vmem:[#allocation2 + $0x68] sm:$0xff] 0.0
      %30 = vst [vmem:[#allocation2 + $0x70] sm:$0xff] 0.0
      %31 = vst [vmem:[#allocation2 + $0x78] sm:$0xff] 0.0
      %32 = vst [vmem:[#allocation2 + $0x80] sm:$0xff] 0.0
      %33 = vst [vmem:[#allocation2 + $0x88] sm:$0xff] 0.0
      %34 = vst [vmem:[#allocation2 + $0x90] sm:$0xff] 0.0
      %35 = vst [vmem:[#allocation2 + $0x98] sm:$0xff] 0.0
      %36 = vst [vmem:[#allocation2 + $0xa0] sm:$0xff] 0.0
      %37 = vst [vmem:[#allocation2 + $0xa8] sm:$0xff] 0.0
      %38 = vst [vmem:[#allocation2 + $0xb0] sm:$0xff] 0.0
      %39 = vst [vmem:[#allocation2 + $0xb8] sm:$0xff] 0.0
      %40 = vst [vmem:[#allocation2 + $0xc0] sm:$0xff] 0.0
      %41 = vst [vmem:[#allocation2 + $0xc8] sm:$0xff] 0.0
      %42 = vst [vmem:[#allocation2 + $0xd0] sm:$0xff] 0.0
      %43 = vst [vmem:[#allocation2 + $0xd8] sm:$0xff] 0.0
      %44 = vst [vmem:[#allocation2 + $0xe0] sm:$0xff] 0.0
      %45 = vst [vmem:[#allocation2 + $0xe8] sm:$0xff] 0.0
      %46 = vst [vmem:[#allocation2 + $0xf0] sm:$0xff] 0.0
      %47 = vst [vmem:[#allocation2 + $0xf8] sm:$0xff] 0.0
    $region13: #{tpu_custom_call.1} parent=1 // pred_fallthru
      _
    %v48 = vld [vmem:[%s0] sm:$0xff]
    %v49 = vld [vmem:[%s0 + $0x8] sm:$0xff]
    %v50 = vld [vmem:[%s0 + $0x10] sm:$0xff]
    %v51 = vld [vmem:[%s0 + $0x18] sm:$0xff]
    %v52 = vld [vmem:[%s0 + $0x20] sm:$0xff]
    %v53 = vld [vmem:[%s0 + $0x28] sm:$0xff]
    %v54 = vld [vmem:[%s0 + $0x30] sm:$0xff]
    %v55 = vld [vmem:[%s0 + $0x38] sm:$0xff]
    %v56 = vld [vmem:[%s0 + $0x40] sm:$0xff]
    %v57 = vld [vmem:[%s0 + $0x48] sm:$0xff]
    %v58 = vld [vmem:[%s0 + $0x50] sm:$0xff]
    %v59 = vld [vmem:[%s0 + $0x58] sm:$0xff]
    %v60 = vld [vmem:[%s0 + $0x60] sm:$0xff]
    %v61 = vld [vmem:[%s0 + $0x68] sm:$0xff]
    %v62 = vld [vmem:[%s0 + $0x70] sm:$0xff]
    %v63 = vld [vmem:[%s0 + $0x78] sm:$0xff]
    %v64 = vld [vmem:[%s0 + $0x80] sm:$0xff]
    %v65 = vld [vmem:[%s0 + $0x88] sm:$0xff]
    %v66 = vld [vmem:[%s0 + $0x90] sm:$0xff]
    %v67 = vld [vmem:[%s0 + $0x98] sm:$0xff]
    %v68 = vld [vmem:[%s0 + $0xa0] sm:$0xff]
    %v69 = vld [vmem:[%s0 + $0xa8] sm:$0xff]
    %v70 = vld [vmem:[%s0 + $0xb0] sm:$0xff]
    %v71 = vld [vmem:[%s0 + $0xb8] sm:$0xff]
    %v72 = vld [vmem:[%s0 + $0xc0] sm:$0xff]
    %v73 = vld [vmem:[%s0 + $0xc8] sm:$0xff]
    %v74 = vld [vmem:[%s0 + $0xd0] sm:$0xff]
    %v75 = vld [vmem:[%s0 + $0xd8] sm:$0xff]
    %v76 = vld [vmem:[%s0 + $0xe0] sm:$0xff]
    %v77 = vld [vmem:[%s0 + $0xe8] sm:$0xff]
    %v78 = vld [vmem:[%s0 + $0xf0] sm:$0xff]
    %v79 = vld [vmem:[%s0 + $0xf8] sm:$0xff]
    %s80 = smul.u32 0, 64
    %v81 = vlaneseq
    %v82 = vand.u32 %v81, 127
    %v83 = vstv %s80
    %v84 = vadd.s32 %v83, %v82
    %85 = vset.pattern.permute.xlu0 0
    %86 = vperm.xlu0 %85, %v48
    %v87 = vpop.permute.xlu0 %86
    %88 = vset.pattern.permute.xlu0 0
    %89 = vperm.xlu0 %88, %v49
    %v90 = vpop.permute.xlu0 %89
    %91 = vset.pattern.permute.xlu0 0
    %92 = vperm.xlu0 %91, %v50
    %v93 = vpop.permute.xlu0 %92
    %94 = vset.pattern.permute.xlu0 0
    %95 = vperm.xlu0 %94, %v51
    %v96 = vpop.permute.xlu0 %95
    %97 = vset.pattern.permute.xlu0 0
    %98 = vperm.xlu0 %97, %v52
    %v99 = vpop.permute.xlu0 %98
    %100 = vset.pattern.permute.xlu0 0
    %101 = vperm.xlu0 %100, %v53
    %v102 = vpop.permute.xlu0 %101
    %103 = vset.pattern.permute.xlu0 0
    %104 = vperm.xlu0 %103, %v54
    %v105 = vpop.permute.xlu0 %104
    %106 = vset.pattern.permute.xlu0 0
    %107 = vperm.xlu0 %106, %v55
    %v108 = vpop.permute.xlu0 %107
    %109 = vset.pattern.permute.xlu0 0
    %110 = vperm.xlu0 %109, %v56
    %v111 = vpop.permute.xlu0 %110
    %112 = vset.pattern.permute.xlu0 0
    %113 = vperm.xlu0 %112, %v57
    %v114 = vpop.permute.xlu0 %113
    %115 = vset.pattern.permute.xlu0 0
    %116 = vperm.xlu0 %115, %v58
    %v117 = vpop.permute.xlu0 %116
    %118 = vset.pattern.permute.xlu0 0
    %119 = vperm.xlu0 %118, %v59
    %v120 = vpop.permute.xlu0 %119
    %121 = vset.pattern.permute.xlu0 0
    %122 = vperm.xlu0 %121, %v60
    %v123 = vpop.permute.xlu0 %122
    %124 = vset.pattern.permute.xlu0 0
    %125 = vperm.xlu0 %124, %v61
    %v126 = vpop.permute.xlu0 %125
    %127 = vset.pattern.permute.xlu0 0
    %128 = vperm.xlu0 %127, %v62
    %v129 = vpop.permute.xlu0 %128
    %130 = vset.pattern.permute.xlu0 0
    %131 = vperm.xlu0 %130, %v63
    %v132 = vpop.permute.xlu0 %131
    %133 = vset.pattern.permute.xlu0 0
    %134 = vperm.xlu0 %133, %v64
    %v135 = vpop.permute.xlu0 %134
    %136 = vset.pattern.permute.xlu0 0
    %137 = vperm.xlu0 %136, %v65
    %v138 = vpop.permute.xlu0 %137
    %139 = vset.pattern.permute.xlu0 0
    %140 = vperm.xlu0 %139, %v66
    %v141 = vpop.permute.xlu0 %140
    %142 = vset.pattern.permute.xlu0 0
    %143 = vperm.xlu0 %142, %v67
    %v144 = vpop.permute.xlu0 %143
    %145 = vset.pattern.permute.xlu0 0
    %146 = vperm.xlu0 %145, %v68
    %v147 = vpop.permute.xlu0 %146
    %148 = vset.pattern.permute.xlu0 0
    %149 = vperm.xlu0 %148, %v69
    %v150 = vpop.permute.xlu0 %149
    %151 = vset.pattern.permute.xlu0 0
    %152 = vperm.xlu0 %151, %v70
    %v153 = vpop.permute.xlu0 %152
    %154 = vset.pattern.permute.xlu0 0
    %155 = vperm.xlu0 %154, %v71
    %v156 = vpop.permute.xlu0 %155
    %157 = vset.pattern.permute.xlu0 0
    %158 = vperm.xlu0 %157, %v72
    %v159 = vpop.permute.xlu0 %158
    %160 = vset.pattern.permute.xlu0 0
    %161 = vperm.xlu0 %160, %v73
    %v162 = vpop.permute.xlu0 %161
    %163 = vset.pattern.permute.xlu0 0
    %164 = vperm.xlu0 %163, %v74
    %v165 = vpop.permute.xlu0 %164
    %166 = vset.pattern.permute.xlu0 0
    %167 = vperm.xlu0 %166, %v75
    %v168 = vpop.permute.xlu0 %167
    %169 = vset.pattern.permute.xlu0 0
    %170 = vperm.xlu0 %169, %v76
    %v171 = vpop.permute.xlu0 %170
    %172 = vset.pattern.permute.xlu0 0
    %173 = vperm.xlu0 %172, %v77
    %v174 = vpop.permute.xlu0 %173
    %175 = vset.pattern.permute.xlu0 0
    %176 = vperm.xlu0 %175, %v78
    %v177 = vpop.permute.xlu0 %176
    %178 = vset.pattern.permute.xlu0 0
    %179 = vperm.xlu0 %178, %v79
    %v180 = vpop.permute.xlu0 %179
    %vm181 = vcmp.eq.s32.totalorder %v84, %v87
    %vm182 = vcmp.eq.s32.totalorder %v84, %v90
    %vm183 = vcmp.eq.s32.totalorder %v84, %v93
    %vm184 = vcmp.eq.s32.totalorder %v84, %v96
    %vm185 = vcmp.eq.s32.totalorder %v84, %v99
    %vm186 = vcmp.eq.s32.totalorder %v84, %v102
    %vm187 = vcmp.eq.s32.totalorder %v84, %v105
    %vm188 = vcmp.eq.s32.totalorder %v84, %v108
    %vm189 = vcmp.eq.s32.totalorder %v84, %v111
    %vm190 = vcmp.eq.s32.totalorder %v84, %v114
    %vm191 = vcmp.eq.s32.totalorder %v84, %v117
    %vm192 = vcmp.eq.s32.totalorder %v84, %v120
    %vm193 = vcmp.eq.s32.totalorder %v84, %v123
    %vm194 = vcmp.eq.s32.totalorder %v84, %v126
    %vm195 = vcmp.eq.s32.totalorder %v84, %v129
    %vm196 = vcmp.eq.s32.totalorder %v84, %v132
    %vm197 = vcmp.eq.s32.totalorder %v84, %v135
    %vm198 = vcmp.eq.s32.totalorder %v84, %v138
    %vm199 = vcmp.eq.s32.totalorder %v84, %v141
    %vm200 = vcmp.eq.s32.totalorder %v84, %v144
    %vm201 = vcmp.eq.s32.totalorder %v84, %v147
    %vm202 = vcmp.eq.s32.totalorder %v84, %v150
    %vm203 = vcmp.eq.s32.totalorder %v84, %v153
    %vm204 = vcmp.eq.s32.totalorder %v84, %v156
    %vm205 = vcmp.eq.s32.totalorder %v84, %v159
    %vm206 = vcmp.eq.s32.totalorder %v84, %v162
    %vm207 = vcmp.eq.s32.totalorder %v84, %v165
    %vm208 = vcmp.eq.s32.totalorder %v84, %v168
    %vm209 = vcmp.eq.s32.totalorder %v84, %v171
    %vm210 = vcmp.eq.s32.totalorder %v84, %v174
    %vm211 = vcmp.eq.s32.totalorder %v84, %v177
    %vm212 = vcmp.eq.s32.totalorder %v84, %v180
    %v213 = vsel %vm181, 1, 0
    %v214 = vsel %vm182, 1, 0
    %v215 = vsel %vm183, 1, 0
    %v216 = vsel %vm184, 1, 0
    %v217 = vsel %vm185, 1, 0
    %v218 = vsel %vm186, 1, 0
    %v219 = vsel %vm187, 1, 0
    %v220 = vsel %vm188, 1, 0
    %v221 = vsel %vm189, 1, 0
    %v222 = vsel %vm190, 1, 0
    %v223 = vsel %vm191, 1, 0
    %v224 = vsel %vm192, 1, 0
    %v225 = vsel %vm193, 1, 0
    %v226 = vsel %vm194, 1, 0
    %v227 = vsel %vm195, 1, 0
    %v228 = vsel %vm196, 1, 0
    %v229 = vsel %vm197, 1, 0
    %v230 = vsel %vm198, 1, 0
    %v231 = vsel %vm199, 1, 0
    %v232 = vsel %vm200, 1, 0
    %v233 = vsel %vm201, 1, 0
    %v234 = vsel %vm202, 1, 0
    %v235 = vsel %vm203, 1, 0
    %v236 = vsel %vm204, 1, 0
    %v237 = vsel %vm205, 1, 0
    %v238 = vsel %vm206, 1, 0
    %v239 = vsel %vm207, 1, 0
    %v240 = vsel %vm208, 1, 0
    %v241 = vsel %vm209, 1, 0
    %v242 = vsel %vm210, 1, 0
    %v243 = vsel %vm211, 1, 0
    %v244 = vsel %vm212, 1, 0
    %v245 = vcvt.s32.f32 %v213
    %v246 = vcvt.s32.f32 %v214
    %v247 = vcvt.s32.f32 %v215
    %v248 = vcvt.s32.f32 %v216
    %v249 = vcvt.s32.f32 %v217
    %v250 = vcvt.s32.f32 %v218
    %v251 = vcvt.s32.f32 %v219
    %v252 = vcvt.s32.f32 %v220
    %v253 = vcvt.s32.f32 %v221
    %v254 = vcvt.s32.f32 %v222
    %v255 = vcvt.s32.f32 %v223
    %v256 = vcvt.s32.f32 %v224
    %v257 = vcvt.s32.f32 %v225
    %v258 = vcvt.s32.f32 %v226
    %v259 = vcvt.s32.f32 %v227
    %v260 = vcvt.s32.f32 %v228
    %v261 = vcvt.s32.f32 %v229
    %v262 = vcvt.s32.f32 %v230
    %v263 = vcvt.s32.f32 %v231
    %v264 = vcvt.s32.f32 %v232
    %v265 = vcvt.s32.f32 %v233
    %v266 = vcvt.s32.f32 %v234
    %v267 = vcvt.s32.f32 %v235
    %v268 = vcvt.s32.f32 %v236
    %v269 = vcvt.s32.f32 %v237
    %v270 = vcvt.s32.f32 %v238
    %v271 = vcvt.s32.f32 %v239
    %v272 = vcvt.s32.f32 %v240
    %v273 = vcvt.s32.f32 %v241
    %v274 = vcvt.s32.f32 %v242
    %v275 = vcvt.s32.f32 %v243
    %v276 = vcvt.s32.f32 %v244
    %v277 = vld [vmem:[#allocation2] sm:$0xff]
    %v278 = vld [vmem:[#allocation2 + $0x8] sm:$0xff]
    %v279 = vld [vmem:[#allocation2 + $0x10] sm:$0xff]
    %v280 = vld [vmem:[#allocation2 + $0x18] sm:$0xff]
    %v281 = vld [vmem:[#allocation2 + $0x20] sm:$0xff]
    %v282 = vld [vmem:[#allocation2 + $0x28] sm:$0xff]
    %v283 = vld [vmem:[#allocation2 + $0x30] sm:$0xff]
    %v284 = vld [vmem:[#allocation2 + $0x38] sm:$0xff]
    %v285 = vld [vmem:[#allocation2 + $0x40] sm:$0xff]
    %v286 = vld [vmem:[#allocation2 + $0x48] sm:$0xff]
    %v287 = vld [vmem:[#allocation2 + $0x50] sm:$0xff]
    %v288 = vld [vmem:[#allocation2 + $0x58] sm:$0xff]
    %v289 = vld [vmem:[#allocation2 + $0x60] sm:$0xff]
    %v290 = vld [vmem:[#allocation2 + $0x68] sm:$0xff]
    %v291 = vld [vmem:[#allocation2 + $0x70] sm:$0xff]
    %v292 = vld [vmem:[#allocation2 + $0x78] sm:$0xff]
    %v293 = vld [vmem:[#allocation2 + $0x80] sm:$0xff]
    %v294 = vld [vmem:[#allocation2 + $0x88] sm:$0xff]
    %v295 = vld [vmem:[#allocation2 + $0x90] sm:$0xff]
    %v296 = vld [vmem:[#allocation2 + $0x98] sm:$0xff]
    %v297 = vld [vmem:[#allocation2 + $0xa0] sm:$0xff]
    %v298 = vld [vmem:[#allocation2 + $0xa8] sm:$0xff]
    %v299 = vld [vmem:[#allocation2 + $0xb0] sm:$0xff]
    %v300 = vld [vmem:[#allocation2 + $0xb8] sm:$0xff]
    %v301 = vld [vmem:[#allocation2 + $0xc0] sm:$0xff]
    %v302 = vld [vmem:[#allocation2 + $0xc8] sm:$0xff]
    %v303 = vld [vmem:[#allocation2 + $0xd0] sm:$0xff]
    %v304 = vld [vmem:[#allocation2 + $0xd8] sm:$0xff]
    %v305 = vld [vmem:[#allocation2 + $0xe0] sm:$0xff]
    %v306 = vld [vmem:[#allocation2 + $0xe8] sm:$0xff]
    %v307 = vld [vmem:[#allocation2 + $0xf0] sm:$0xff]
    %v308 = vld [vmem:[#allocation2 + $0xf8] sm:$0xff]
    %v309 = vld [vmem:[%s1] sm:$0xff]
    %v310 = vld [vmem:[%s1 + $0x8] sm:$0xff]
    %v311 = vld [vmem:[%s1 + $0x10] sm:$0xff]
    %v312 = vld [vmem:[%s1 + $0x18] sm:$0xff]
    %v313 = vld [vmem:[%s1 + $0x20] sm:$0xff]
    %v314 = vld [vmem:[%s1 + $0x28] sm:$0xff]
    %v315 = vld [vmem:[%s1 + $0x30] sm:$0xff]
    %v316 = vld [vmem:[%s1 + $0x38] sm:$0xff]
    %vm317 = vcmask 523264
    %v319 = vsel %vm317, %v245, 0
    %v322 = vsel %vm317, %v246, 0
    %v325 = vsel %vm317, %v247, 0
    %v328 = vsel %vm317, %v248, 0
    %v331 = vsel %vm317, %v249, 0
    %v334 = vsel %vm317, %v250, 0
    %v337 = vsel %vm317, %v251, 0
    %v340 = vsel %vm317, %v252, 0
    %v343 = vsel %vm317, %v253, 0
    %v346 = vsel %vm317, %v254, 0
    %v349 = vsel %vm317, %v255, 0
    %v352 = vsel %vm317, %v256, 0
    %v355 = vsel %vm317, %v257, 0
    %v358 = vsel %vm317, %v258, 0
    %v361 = vsel %vm317, %v259, 0
    %v364 = vsel %vm317, %v260, 0
    %v367 = vsel %vm317, %v261, 0
    %v370 = vsel %vm317, %v262, 0
    %v373 = vsel %vm317, %v263, 0
    %v376 = vsel %vm317, %v264, 0
    %v379 = vsel %vm317, %v265, 0
    %v382 = vsel %vm317, %v266, 0
    %v385 = vsel %vm317, %v267, 0
    %v388 = vsel %vm317, %v268, 0
    %v391 = vsel %vm317, %v269, 0
    %v394 = vsel %vm317, %v270, 0
    %v397 = vsel %vm317, %v271, 0
    %v400 = vsel %vm317, %v272, 0
    %v403 = vsel %vm317, %v273, 0
    %v406 = vsel %vm317, %v274, 0
    %v409 = vsel %vm317, %v275, 0
    %v412 = vsel %vm317, %v276, 0
    %414 = vmatprep.subr.mxu0 0.0
    %415 = vmatpush1.msra.mxu0 %v309
    %416 = vmatprep.subr.mxu0 0.0
    %417 = vmatpush1.msra.mxu0 %v310
    %418 = vmatprep.subr.mxu0 0.0
    %419 = vmatpush1.msra.mxu0 %v311
    %420 = vmatprep.subr.mxu0 0.0
    %421 = vmatpush1.msra.mxu0 %v312
    %422 = vmatprep.subr.mxu0 0.0
    %423 = vmatpush1.msra.mxu0 %v313
    %424 = vmatprep.subr.mxu0 0.0
    %425 = vmatpush1.msra.mxu0 %v314
    %426 = vmatprep.subr.mxu0 0.0
    %427 = vmatpush1.msra.mxu0 %v315
    %428 = vmatprep.subr.mxu0 0.0
    %429 = vmatpush1.msra.mxu0 %v316
    %430 = vmatprep.subr.mxu0 0.0
    %431 = vmatpush1.msra.mxu0 0.0
    %432 = vmatprep.subr.mxu0 0.0
    %433 = vmatpush1.msra.mxu0 0.0
    %434 = vmatprep.subr.mxu0 0.0
    %435 = vmatpush1.msra.mxu0 0.0
    %436 = vmatprep.subr.mxu0 0.0
    %437 = vmatpush1.msra.mxu0 0.0
    %438 = vmatprep.subr.mxu0 0.0
    %439 = vmatpush1.msra.mxu0 0.0
    %440 = vmatprep.subr.mxu0 0.0
    %441 = vmatpush1.msra.mxu0 0.0
    %442 = vmatprep.subr.mxu0 0.0
    %443 = vmatpush1.msra.mxu0 0.0
    %444 = vmatprep.subr.mxu0 0.0
    %445 = vmatpush1.msra.mxu0 0.0
    %446 = vmatprep.subr.mxu0 0.0
    %447 = vmatpush1.msra.mxu0 0.0
    %448 = vmatprep.subr.mxu0 0.0
    %449 = vmatpush1.msra.mxu0 0.0
    %450 = vmatprep.subr.mxu0 0.0
    %451 = vmatpush1.msra.mxu0 0.0
    %452 = vmatprep.subr.mxu0 0.0
    %453 = vmatpush1.msra.mxu0 0.0
    %454 = vmatprep.subr.mxu0 0.0
    %455 = vmatpush1.msra.mxu0 0.0
    %456 = vmatprep.subr.mxu0 0.0
    %457 = vmatpush1.msra.mxu0 0.0
    %458 = vmatprep.subr.mxu0 0.0
    %459 = vmatpush1.msra.mxu0 0.0
    %460 = vmatprep.subr.mxu0 0.0
    %461 = vmatpush1.msra.mxu0 0.0
    %462 = vmatprep.subr.mxu0 0.0
    %463 = vmatpush1.msra.mxu0 0.0
    %464 = vmatprep.subr.mxu0 0.0
    %465 = vmatpush1.msra.mxu0 0.0
    %466 = vmatprep.subr.mxu0 0.0
    %467 = vmatpush1.msra.mxu0 0.0
    %468 = vmatprep.subr.mxu0 0.0
    %469 = vmatpush1.msra.mxu0 0.0
    %470 = vmatprep.subr.mxu0 0.0
    %471 = vmatpush1.msra.mxu0 0.0
    %472 = vmatprep.subr.mxu0 0.0
    %473 = vmatpush1.msra.mxu0 0.0
    %474 = vmatprep.subr.mxu0 0.0
    %475 = vmatpush1.msra.mxu0 0.0
    %476 = vmatprep.subr.mxu0 0.0
    %477 = vmatpush1.msra.mxu0 0.0
    %478 = vmatprep.mubr.f32.mxu0 0.0
    %479 = vmatmul.mubr.f32.gmra.mrb[0].mxu0 %v319
    %v480 = vpop.f32.mrb[0].mxu0
    %v481 = vadd.f32 0.0, %v480
    %v482 = vpop.f32.mrb[0].mxu0
    %483 = vmatprep.mubr.f32.mxu0 0.0
    %484 = vmatmul.mubr.f32.gmra.mrb[0].mxu0 %v322
    %v485 = vpop.f32.mrb[0].mxu0
    %v486 = vadd.f32 0.0, %v485
    %v487 = vpop.f32.mrb[0].mxu0
    %488 = vmatprep.mubr.f32.mxu0 0.0
    %489 = vmatmul.mubr.f32.gmra.mrb[0].mxu0 %v325
    %v490 = vpop.f32.mrb[0].mxu0
    %v491 = vadd.f32 0.0, %v490
    %v492 = vpop.f32.mrb[0].mxu0
    %493 = vmatprep.mubr.f32.mxu0 0.0
    %494 = vmatmul.mubr.f32.gmra.mrb[0].mxu0 %v328
    %v495 = vpop.f32.mrb[0].mxu0
    %v496 = vadd.f32 0.0, %v495
    %v497 = vpop.f32.mrb[0].mxu0
    %498 = vmatprep.mubr.f32.mxu0 0.0
    %499 = vmatmul.mubr.f32.gmra.mrb[0].mxu0 %v331
    %v500 = vpop.f32.mrb[0].mxu0
    %v501 = vadd.f32 0.0, %v500
    %v502 = vpop.f32.mrb[0].mxu0
    %503 = vmatprep.mubr.f32.mxu0 0.0
    %504 = vmatmul.mubr.f32.gmra.mrb[0].mxu0 %v334
    %v505 = vpop.f32.mrb[0].mxu0
    %v506 = vadd.f32 0.0, %v505
    %v507 = vpop.f32.mrb[0].mxu0
    %508 = vmatprep.mubr.f32.mxu0 0.0
    %509 = vmatmul.mubr.f32.gmra.mrb[0].mxu0 %v337
    %v510 = vpop.f32.mrb[0].mxu0
    %v511 = vadd.f32 0.0, %v510
    %v512 = vpop.f32.mrb[0].mxu0
    %513 = vmatprep.mubr.f32.mxu0 0.0
    %514 = vmatmul.mubr.f32.gmra.mrb[0].mxu0 %v340
    %v515 = vpop.f32.mrb[0].mxu0
    %v516 = vadd.f32 0.0, %v515
    %v517 = vpop.f32.mrb[0].mxu0
    %518 = vmatprep.mubr.f32.mxu0 0.0
    %519 = vmatmul.mubr.f32.gmra.mrb[0].mxu0 %v343
    %v520 = vpop.f32.mrb[0].mxu0
    %v521 = vadd.f32 0.0, %v520
    %v522 = vpop.f32.mrb[0].mxu0
    %523 = vmatprep.mubr.f32.mxu0 0.0
    %524 = vmatmul.mubr.f32.gmra.mrb[0].mxu0 %v346
    %v525 = vpop.f32.mrb[0].mxu0
    %v526 = vadd.f32 0.0, %v525
    %v527 = vpop.f32.mrb[0].mxu0
    %528 = vmatprep.mubr.f32.mxu0 0.0
    %529 = vmatmul.mubr.f32.gmra.mrb[0].mxu0 %v349
    %v530 = vpop.f32.mrb[0].mxu0
    %v531 = vadd.f32 0.0, %v530
    %v532 = vpop.f32.mrb[0].mxu0
    %533 = vmatprep.mubr.f32.mxu0 0.0
    %534 = vmatmul.mubr.f32.gmra.mrb[0].mxu0 %v352
    %v535 = vpop.f32.mrb[0].mxu0
    %v536 = vadd.f32 0.0, %v535
    %v537 = vpop.f32.mrb[0].mxu0
    %538 = vmatprep.mubr.f32.mxu0 0.0
    %539 = vmatmul.mubr.f32.gmra.mrb[0].mxu0 %v355
    %v540 = vpop.f32.mrb[0].mxu0
    %v541 = vadd.f32 0.0, %v540
    %v542 = vpop.f32.mrb[0].mxu0
    %543 = vmatprep.mubr.f32.mxu0 0.0
    %544 = vmatmul.mubr.f32.gmra.mrb[0].mxu0 %v358
    %v545 = vpop.f32.mrb[0].mxu0
    %v546 = vadd.f32 0.0, %v545
    %v547 = vpop.f32.mrb[0].mxu0
    %548 = vmatprep.mubr.f32.mxu0 0.0
    %549 = vmatmul.mubr.f32.gmra.mrb[0].mxu0 %v361
    %v550 = vpop.f32.mrb[0].mxu0
    %v551 = vadd.f32 0.0, %v550
    %v552 = vpop.f32.mrb[0].mxu0
    %553 = vmatprep.mubr.f32.mxu0 0.0
    %554 = vmatmul.mubr.f32.gmra.mrb[0].mxu0 %v364
    %v555 = vpop.f32.mrb[0].mxu0
    %v556 = vadd.f32 0.0, %v555
    %v557 = vpop.f32.mrb[0].mxu0
    %558 = vmatprep.mubr.f32.mxu0 0.0
    %559 = vmatmul.mubr.f32.gmra.mrb[0].mxu0 %v367
    %v560 = vpop.f32.mrb[0].mxu0
    %v561 = vadd.f32 0.0, %v560
    %v562 = vpop.f32.mrb[0].mxu0
    %563 = vmatprep.mubr.f32.mxu0 0.0
    %564 = vmatmul.mubr.f32.gmra.mrb[0].mxu0 %v370
    %v565 = vpop.f32.mrb[0].mxu0
    %v566 = vadd.f32 0.0, %v565
    %v567 = vpop.f32.mrb[0].mxu0
    %568 = vmatprep.mubr.f32.mxu0 0.0
    %569 = vmatmul.mubr.f32.gmra.mrb[0].mxu0 %v373
    %v570 = vpop.f32.mrb[0].mxu0
    %v571 = vadd.f32 0.0, %v570
    %v572 = vpop.f32.mrb[0].mxu0
    %573 = vmatprep.mubr.f32.mxu0 0.0
    %574 = vmatmul.mubr.f32.gmra.mrb[0].mxu0 %v376
    %v575 = vpop.f32.mrb[0].mxu0
    %v576 = vadd.f32 0.0, %v575
    %v577 = vpop.f32.mrb[0].mxu0
    %578 = vmatprep.mubr.f32.mxu0 0.0
    %579 = vmatmul.mubr.f32.gmra.mrb[0].mxu0 %v379
    %v580 = vpop.f32.mrb[0].mxu0
    %v581 = vadd.f32 0.0, %v580
    %v582 = vpop.f32.mrb[0].mxu0
    %583 = vmatprep.mubr.f32.mxu0 0.0
    %584 = vmatmul.mubr.f32.gmra.mrb[0].mxu0 %v382
    %v585 = vpop.f32.mrb[0].mxu0
    %v586 = vadd.f32 0.0, %v585
    %v587 = vpop.f32.mrb[0].mxu0
    %588 = vmatprep.mubr.f32.mxu0 0.0
    %589 = vmatmul.mubr.f32.gmra.mrb[0].mxu0 %v385
    %v590 = vpop.f32.mrb[0].mxu0
    %v591 = vadd.f32 0.0, %v590
    %v592 = vpop.f32.mrb[0].mxu0
    %593 = vmatprep.mubr.f32.mxu0 0.0
    %594 = vmatmul.mubr.f32.gmra.mrb[0].mxu0 %v388
    %v595 = vpop.f32.mrb[0].mxu0
    %v596 = vadd.f32 0.0, %v595
    %v597 = vpop.f32.mrb[0].mxu0
    %598 = vmatprep.mubr.f32.mxu0 0.0
    %599 = vmatmul.mubr.f32.gmra.mrb[0].mxu0 %v391
    %v600 = vpop.f32.mrb[0].mxu0
    %v601 = vadd.f32 0.0, %v600
    %v602 = vpop.f32.mrb[0].mxu0
    %603 = vmatprep.mubr.f32.mxu0 0.0
    %604 = vmatmul.mubr.f32.gmra.mrb[0].mxu0 %v394
    %v605 = vpop.f32.mrb[0].mxu0
    %v606 = vadd.f32 0.0, %v605
    %v607 = vpop.f32.mrb[0].mxu0
    %608 = vmatprep.mubr.f32.mxu0 0.0
    %609 = vmatmul.mubr.f32.gmra.mrb[0].mxu0 %v397
    %v610 = vpop.f32.mrb[0].mxu0
    %v611 = vadd.f32 0.0, %v610
    %v612 = vpop.f32.mrb[0].mxu0
    %613 = vmatprep.mubr.f32.mxu0 0.0
    %614 = vmatmul.mubr.f32.gmra.mrb[0].mxu0 %v400
    %v615 = vpop.f32.mrb[0].mxu0
    %v616 = vadd.f32 0.0, %v615
    %v617 = vpop.f32.mrb[0].mxu0
    %618 = vmatprep.mubr.f32.mxu0 0.0
    %619 = vmatmul.mubr.f32.gmra.mrb[0].mxu0 %v403
    %v620 = vpop.f32.mrb[0].mxu0
    %v621 = vadd.f32 0.0, %v620
    %v622 = vpop.f32.mrb[0].mxu0
    %623 = vmatprep.mubr.f32.mxu0 0.0
    %624 = vmatmul.mubr.f32.gmra.mrb[0].mxu0 %v406
    %v625 = vpop.f32.mrb[0].mxu0
    %v626 = vadd.f32 0.0, %v625
    %v627 = vpop.f32.mrb[0].mxu0
    %628 = vmatprep.mubr.f32.mxu0 0.0
    %629 = vmatmul.mubr.f32.gmra.mrb[0].mxu0 %v409
    %v630 = vpop.f32.mrb[0].mxu0
    %v631 = vadd.f32 0.0, %v630
    %v632 = vpop.f32.mrb[0].mxu0
    %633 = vmatprep.mubr.f32.mxu0 0.0
    %634 = vmatmul.mubr.f32.gmra.mrb[0].mxu0 %v412
    %v635 = vpop.f32.mrb[0].mxu0
    %v636 = vadd.f32 0.0, %v635
    %v637 = vpop.f32.mrb[0].mxu0
    %638 = vdwg.mxu0
    %v639 = vadd.f32 %v277, %v481
    %v640 = vadd.f32 %v278, %v486
    %v641 = vadd.f32 %v279, %v491
    %v642 = vadd.f32 %v280, %v496
    %v643 = vadd.f32 %v281, %v501
    %v644 = vadd.f32 %v282, %v506
    %v645 = vadd.f32 %v283, %v511
    %v646 = vadd.f32 %v284, %v516
    %v647 = vadd.f32 %v285, %v521
    %v648 = vadd.f32 %v286, %v526
    %v649 = vadd.f32 %v287, %v531
    %v650 = vadd.f32 %v288, %v536
    %v651 = vadd.f32 %v289, %v541
    %v652 = vadd.f32 %v290, %v546
    %v653 = vadd.f32 %v291, %v551
    %v654 = vadd.f32 %v292, %v556
    %v655 = vadd.f32 %v293, %v561
    %v656 = vadd.f32 %v294, %v566
    %v657 = vadd.f32 %v295, %v571
    %v658 = vadd.f32 %v296, %v576
    %v659 = vadd.f32 %v297, %v581
    %v660 = vadd.f32 %v298, %v586
    %v661 = vadd.f32 %v299, %v591
    %v662 = vadd.f32 %v300, %v596
    %v663 = vadd.f32 %v301, %v601
    %v664 = vadd.f32 %v302, %v606
    %v665 = vadd.f32 %v303, %v611
    %v666 = vadd.f32 %v304, %v616
    %v667 = vadd.f32 %v305, %v621
    %v668 = vadd.f32 %v306, %v626
    %v669 = vadd.f32 %v307, %v631
    %v670 = vadd.f32 %v308, %v636
    %671 = vst [vmem:[#allocation2] sm:$0xff] %v639
    %672 = vst [vmem:[#allocation2 + $0x8] sm:$0xff] %v640
    %673 = vst [vmem:[#allocation2 + $0x10] sm:$0xff] %v641
    %674 = vst [vmem:[#allocation2 + $0x18] sm:$0xff] %v642
    %675 = vst [vmem:[#allocation2 + $0x20] sm:$0xff] %v643
    %676 = vst [vmem:[#allocation2 + $0x28] sm:$0xff] %v644
    %677 = vst [vmem:[#allocation2 + $0x30] sm:$0xff] %v645
    %678 = vst [vmem:[#allocation2 + $0x38] sm:$0xff] %v646
    %679 = vst [vmem:[#allocation2 + $0x40] sm:$0xff] %v647
    %680 = vst [vmem:[#allocation2 + $0x48] sm:$0xff] %v648
    %681 = vst [vmem:[#allocation2 + $0x50] sm:$0xff] %v649
    %682 = vst [vmem:[#allocation2 + $0x58] sm:$0xff] %v650
    %683 = vst [vmem:[#allocation2 + $0x60] sm:$0xff] %v651
    %684 = vst [vmem:[#allocation2 + $0x68] sm:$0xff] %v652
    %685 = vst [vmem:[#allocation2 + $0x70] sm:$0xff] %v653
    %686 = vst [vmem:[#allocation2 + $0x78] sm:$0xff] %v654
    %687 = vst [vmem:[#allocation2 + $0x80] sm:$0xff] %v655
    %688 = vst [vmem:[#allocation2 + $0x88] sm:$0xff] %v656
    %689 = vst [vmem:[#allocation2 + $0x90] sm:$0xff] %v657
    %690 = vst [vmem:[#allocation2 + $0x98] sm:$0xff] %v658
    %691 = vst [vmem:[#allocation2 + $0xa0] sm:$0xff] %v659
    %692 = vst [vmem:[#allocation2 + $0xa8] sm:$0xff] %v660
    %693 = vst [vmem:[#allocation2 + $0xb0] sm:$0xff] %v661
    %694 = vst [vmem:[#allocation2 + $0xb8] sm:$0xff] %v662
    %695 = vst [vmem:[#allocation2 + $0xc0] sm:$0xff] %v663
    %696 = vst [vmem:[#allocation2 + $0xc8] sm:$0xff] %v664
    %697 = vst [vmem:[#allocation2 + $0xd0] sm:$0xff] %v665
    %698 = vst [vmem:[#allocation2 + $0xd8] sm:$0xff] %v666
    %699 = vst [vmem:[#allocation2 + $0xe0] sm:$0xff] %v667
    %700 = vst [vmem:[#allocation2 + $0xe8] sm:$0xff] %v668
    %701 = vst [vmem:[#allocation2 + $0xf0] sm:$0xff] %v669
    %702 = vst [vmem:[#allocation2 + $0xf8] sm:$0xff] %v670
    // Predicated region
    $region14: #{tpu_custom_call.1} parent=1 // pred_check
      %p703 = pneg %p12
    $region15: #{tpu_custom_call.1} parent=1 // pred_check_branch
      %705 = sbr.rel (%p703) target = $region17
    $region16: #{tpu_custom_call.1} parent=1 // pred_region
      %v706 = vld [vmem:[#allocation2] sm:$0xff]
      %v707 = vld [vmem:[#allocation2 + $0x8] sm:$0xff]
      %v708 = vld [vmem:[#allocation2 + $0x10] sm:$0xff]
      %v709 = vld [vmem:[#allocation2 + $0x18] sm:$0xff]
      %v710 = vld [vmem:[#allocation2 + $0x20] sm:$0xff]
      %v711 = vld [vmem:[#allocation2 + $0x28] sm:$0xff]
      %v712 = vld [vmem:[#allocation2 + $0x30] sm:$0xff]
      %v713 = vld [vmem:[#allocation2 + $0x38] sm:$0xff]
      %v714 = vld [vmem:[#allocation2 + $0x40] sm:$0xff]
      %v715 = vld [vmem:[#allocation2 + $0x48] sm:$0xff]
      %v716 = vld [vmem:[#allocation2 + $0x50] sm:$0xff]
      %v717 = vld [vmem:[#allocation2 + $0x58] sm:$0xff]
      %v718 = vld [vmem:[#allocation2 + $0x60] sm:$0xff]
      %v719 = vld [vmem:[#allocation2 + $0x68] sm:$0xff]
      %v720 = vld [vmem:[#allocation2 + $0x70] sm:$0xff]
      %v721 = vld [vmem:[#allocation2 + $0x78] sm:$0xff]
      %v722 = vld [vmem:[#allocation2 + $0x80] sm:$0xff]
      %v723 = vld [vmem:[#allocation2 + $0x88] sm:$0xff]
      %v724 = vld [vmem:[#allocation2 + $0x90] sm:$0xff]
      %v725 = vld [vmem:[#allocation2 + $0x98] sm:$0xff]
      %v726 = vld [vmem:[#allocation2 + $0xa0] sm:$0xff]
      %v727 = vld [vmem:[#allocation2 + $0xa8] sm:$0xff]
      %v728 = vld [vmem:[#allocation2 + $0xb0] sm:$0xff]
      %v729 = vld [vmem:[#allocation2 + $0xb8] sm:$0xff]
      %v730 = vld [vmem:[#allocation2 + $0xc0] sm:$0xff]
      %v731 = vld [vmem:[#allocation2 + $0xc8] sm:$0xff]
      %v732 = vld [vmem:[#allocation2 + $0xd0] sm:$0xff]
      %v733 = vld [vmem:[#allocation2 + $0xd8] sm:$0xff]
      %v734 = vld [vmem:[#allocation2 + $0xe0] sm:$0xff]
      %v735 = vld [vmem:[#allocation2 + $0xe8] sm:$0xff]
      %v736 = vld [vmem:[#allocation2 + $0xf0] sm:$0xff]
      %v737 = vld [vmem:[#allocation2 + $0xf8] sm:$0xff]
      %738 = vst [vmem:[#allocation3] sm:$0xff] %v706
      %739 = vst [vmem:[#allocation3 + $0x8] sm:$0xff] %v707
      %740 = vst [vmem:[#allocation3 + $0x10] sm:$0xff] %v708
      %741 = vst [vmem:[#allocation3 + $0x18] sm:$0xff] %v709
      %742 = vst [vmem:[#allocation3 + $0x20] sm:$0xff] %v710
      %743 = vst [vmem:[#allocation3 + $0x28] sm:$0xff] %v711
      %744 = vst [vmem:[#allocation3 + $0x30] sm:$0xff] %v712
      %745 = vst [vmem:[#allocation3 + $0x38] sm:$0xff] %v713
      %746 = vst [vmem:[#allocation3 + $0x40] sm:$0xff] %v714
      %747 = vst [vmem:[#allocation3 + $0x48] sm:$0xff] %v715
      %748 = vst [vmem:[#allocation3 + $0x50] sm:$0xff] %v716
      %749 = vst [vmem:[#allocation3 + $0x58] sm:$0xff] %v717
      %750 = vst [vmem:[#allocation3 + $0x60] sm:$0xff] %v718
      %751 = vst [vmem:[#allocation3 + $0x68] sm:$0xff] %v719
      %752 = vst [vmem:[#allocation3 + $0x70] sm:$0xff] %v720
      %753 = vst [vmem:[#allocation3 + $0x78] sm:$0xff] %v721
      %754 = vst [vmem:[#allocation3 + $0x80] sm:$0xff] %v722
      %755 = vst [vmem:[#allocation3 + $0x88] sm:$0xff] %v723
      %756 = vst [vmem:[#allocation3 + $0x90] sm:$0xff] %v724
      %757 = vst [vmem:[#allocation3 + $0x98] sm:$0xff] %v725
      %758 = vst [vmem:[#allocation3 + $0xa0] sm:$0xff] %v726
      %759 = vst [vmem:[#allocation3 + $0xa8] sm:$0xff] %v727
      %760 = vst [vmem:[#allocation3 + $0xb0] sm:$0xff] %v728
      %761 = vst [vmem:[#allocation3 + $0xb8] sm:$0xff] %v729
      %762 = vst [vmem:[#allocation3 + $0xc0] sm:$0xff] %v730
      %763 = vst [vmem:[#allocation3 + $0xc8] sm:$0xff] %v731
      %764 = vst [vmem:[#allocation3 + $0xd0] sm:$0xff] %v732
      %765 = vst [vmem:[#allocation3 + $0xd8] sm:$0xff] %v733
      %766 = vst [vmem:[#allocation3 + $0xe0] sm:$0xff] %v734
      %767 = vst [vmem:[#allocation3 + $0xe8] sm:$0xff] %v735
      %768 = vst [vmem:[#allocation3 + $0xf0] sm:$0xff] %v736
      %769 = vst [vmem:[#allocation3 + $0xf8] sm:$0xff] %v737
    $region17: #{tpu_custom_call.1} parent=1 // pred_fallthru
      _
    // Predicated region
    $region18: #{tpu_custom_call.1} parent=1 // pred_check
      _
    $region19: #{tpu_custom_call.1} parent=1 // pred_check_branch
      %771 = sbr.rel (0) target = $region21
    $region20: #{tpu_custom_call.1} parent=1 // pred_region
      %s773 = ssub.s32 4096, 4096
      %774 = vsyncadd [#allocation4], %s773
      %s775 = sshll.u32 [#allocation3], 4
      %s776 = int_to_ptr.vmem [resolvable:$true] %s775
      %781 = dma.vmem_to_hbm [thread:$0]  %s776, 4096, %s2, [#allocation4], 128, 128, 8
    $region21: #{tpu_custom_call.1} parent=1 // pred_fallthru
      _
    // Predicated region
    $region22: #{tpu_custom_call.1} parent=1 // pred_check
      _
    $region23: #{tpu_custom_call.1} parent=1 // pred_check_branch
      %783 = sbr.rel (0) target = $region25
    $region24: #{tpu_custom_call.1} parent=1 // pred_region
      %784 = dma.done [#allocation4], 4096
    $region25: #{tpu_custom_call.1} parent=1 // pred_fallthru
      _
    %785 = vsyncpa [#allocation4], 1

</llo_original>
